<compile_context>
chip_gen: v7x
topology: tpu7x:2x2x1
jax: 0.10.0
libtpu: 0.0.40
codegen_flags: <defaults>
</compile_context>

<pallas_src>
import functools

import jax
import jax.numpy as jnp
from jax.experimental import pallas as pl
from jax.experimental.pallas import tpu as pltpu


# ----------------------------------------------------------------------------
# Kernel
# ----------------------------------------------------------------------------
def _classifier_kernel(x_ref, w1_ref, w2_ref, w3_ref, b_ref, o_ref, *,
                       use_non_linear, hidden_dim, compute_dtype):
    x = x_ref[...]                       # (TB, input_dim) f32
    b = b_ref[...]                       # (3, Dmax) f32, rows = b1/b2/b3 (padded)
    out_lanes = o_ref.shape[-1]          # lane-padded output width (mult of 128)
    b1 = b[0:1, :hidden_dim]
    b2 = b[1:2, :hidden_dim]
    b3 = b[2:3, :out_lanes]              # padded cols carry -1e30 (see pack_params)

    def mm(a, w_ref):
        # Matmul operands optionally in bf16; always accumulate in f32 on MXU.
        a_c = a.astype(compute_dtype)
        w_c = w_ref[...].astype(compute_dtype)
        return jnp.dot(a_c, w_c, preferred_element_type=jnp.float32)

    # lin1 (+ ReLU)
    h = mm(x, w1_ref) + b1
    if use_non_linear:
        h = jnp.maximum(h, 0.0)

    # lin2 (+ ReLU)
    h = mm(h, w2_ref) + b2
    if use_non_linear:
        h = jnp.maximum(h, 0.0)

    # lin3 (padded columns -> logits ~ -1e30; they contribute ~0 to softmax)
    logits = mm(h, w3_ref) + b3

    # LogSoftmax over dim=1 (feature axis), f32 throughout.
    m = jnp.max(logits, axis=-1, keepdims=True)
    shifted = logits - m
    lse = jnp.log(jnp.sum(jnp.exp(shifted), axis=-1, keepdims=True))
    # Lane-dense (multiple-of-128) store: unmasked vst.
    o_ref[...] = (shifted - lse).astype(o_ref.dtype)


# ----------------------------------------------------------------------------
# Wrapper
# ----------------------------------------------------------------------------
_TB_MAX = 512  # rows per batch tile; sized to fit v7x's smaller VMEM easily.


def classifier_forward(x, packed_params, *, use_non_linear=True,
                       compute_dtype=jnp.float32, tb_max=_TB_MAX):
    """x: (B, input_dim) f32. packed_params: output of `pack_params`."""
    w1 = packed_params["w1t"]          # (input_dim, hidden_dim)
    w2 = packed_params["w2t"]          # (hidden_dim, hidden_dim)
    w3 = packed_params["w3t"]          # (hidden_dim, out_lanes)  lane-padded
    bp = packed_params["b_packed"]     # (3, max(hidden_dim, out_lanes))
    output_dim = int(packed_params["output_dim"])

    input_dim, hidden_dim = w1.shape
    out_lanes = w3.shape[1]
    B = x.shape[0]

    # Sublane-align the batch and pick a tile size.
    b_aligned = ((B + 7) // 8) * 8
    tb = min(b_aligned, tb_max)
    num_tiles = -(-b_aligned // tb)          # ceil div (Python ints)
    b_padded = num_tiles * tb
    if b_padded != B:
        x = jnp.pad(x, ((0, b_padded - B), (0, 0)))

    kernel = functools.partial(
        _classifier_kernel,
        use_non_linear=use_non_linear,
        hidden_dim=hidden_dim,
        compute_dtype=compute_dtype,
    )

    # Weights/biases: full-array blocks, constant block index -> VMEM-resident
    # across the batch grid (no re-DMA per step).
    resident = lambda a: pl.BlockSpec(a.shape, lambda i: (0,) * a.ndim)

    out = pl.pallas_call(
        kernel,
        out_shape=jax.ShapeDtypeStruct((b_padded, out_lanes), jnp.float32),
        grid=(num_tiles,),
        in_specs=[
            pl.BlockSpec((tb, input_dim), lambda i: (i, 0)),   # x: batch-tiled
            resident(w1), resident(w2), resident(w3), resident(bp),
        ],
        out_specs=pl.BlockSpec((tb, out_lanes), lambda i: (i, 0)),
        compiler_params=pltpu.CompilerParams(
            dimension_semantics=("parallel",)),
    )(x, w1, w2, w3, bp)

    # Drop batch padding and lane padding (wrapper-side layout plumbing).
    return out[:B, :output_dim]


# ----------------------------------------------------------------------------
# Params: PyTorch-layout init + one-time packing (hoisted out of the call path)
# ----------------------------------------------------------------------------
def init_params_torch(key, input_dim, hidden_dim, output_dim):
    """nn.Linear-style init, PyTorch layout: wi (out, in), bi (out,)."""
    ks = jax.random.split(key, 6)

    def lin(kw, kb, fan_in, fan_out):
        bound = 1.0 / float(fan_in) ** 0.5
        w = jax.random.uniform(kw, (fan_out, fan_in), jnp.float32, -bound, bound)
        b = jax.random.uniform(kb, (fan_out,), jnp.float32, -bound, bound)
        return w, b

    w1, b1 = lin(ks[0], ks[1], input_dim, hidden_dim)
    w2, b2 = lin(ks[2], ks[3], hidden_dim, hidden_dim)
    w3, b3 = lin(ks[4], ks[5], hidden_dim, output_dim)
    return dict(w1=w1, b1=b1, w2=w2, b2=b2, w3=w3, b3=b3)


_NEG_BIG = -1e30  # padded-logit bias; exp() underflows to 0, no NaN/Inf issues.


def pack_params(p, weight_dtype=jnp.float32):
    """One-time layout conversion (not per forward call):
      * transpose weights to (in, out),
      * pad the classifier head to a multiple of 128 output lanes
        (padded w3 columns = 0, padded b3 entries = -1e30) so the kernel's
        final store is lane-dense and log-softmax over real columns is exact,
      * pack the three biases into one (3, Dmax) operand."""
    hidden_dim = p["w1"].shape[0]
    output_dim = p["w3"].shape[0]
    out_lanes = ((output_dim + 127) // 128) * 128
    dmax = max(hidden_dim, out_lanes)

    w3t = jnp.pad(p["w3"].T, ((0, 0), (0, out_lanes - output_dim)))
    b3 = jnp.pad(p["b3"], (0, out_lanes - output_dim), constant_values=_NEG_BIG)

    def row(b):
        return jnp.pad(b, (0, dmax - b.shape[0]))

    return dict(
        w1t=jnp.asarray(p["w1"].T, weight_dtype),
        w2t=jnp.asarray(p["w2"].T, weight_dtype),
        w3t=jnp.asarray(w3t, weight_dtype),
        b_packed=jnp.stack([row(p["b1"]), row(p["b2"]), row(b3)], 0)
                   .astype(jnp.float32),
        output_dim=output_dim,
    )


# ----------------------------------------------------------------------------
# Reference (pure JAX, PyTorch layout)
# ----------------------------------------------------------------------------
def reference_forward(x, p, use_non_linear=True):
    h = x @ p["w1"].T + p["b1"]
    if use_non_linear:
        h = jnp.maximum(h, 0.0)
    h = h @ p["w2"].T + p["b2"]
    if use_non_linear:
        h = jnp.maximum(h, 0.0)
    logits = h @ p["w3"].T + p["b3"]
    return jax.nn.log_softmax(logits, axis=1)


# ----------------------------------------------------------------------------
# Test
# ----------------------------------------------------------------------------
if __name__ == "__main__":
    key = jax.random.PRNGKey(0)
    kx, kp, kx2 = jax.random.split(key, 3)

    batch, input_dim, hidden_dim, output_dim = 8, 32, 32, 16
    params = init_params_torch(kp, input_dim, hidden_dim, output_dim)
    packed = pack_params(params)

    # Case 1: small batch, single tile, with and without non-linearity.
    x = jax.random.normal(kx, (batch, input_dim), jnp.float32)
    for use_nl in (True, False):
        out = classifier_forward(x, packed, use_non_linear=use_nl)
        out = jax.block_until_ready(out)
        ref = reference_forward(x, params, use_non_linear=use_nl)
        assert out.shape == (batch, output_dim)
        assert jnp.allclose(out, ref, atol=1e-4, rtol=1e-4)

    # Case 2: batch not tile-aligned + multi-tile grid (exercises batch padding,
    # the batch-parallel grid path with VMEM-resident weights, and the
    # lane-padded output slab).
    batch2 = 200
    x2 = jax.random.normal(kx2, (batch2, input_dim), jnp.float32)
    out2 = classifier_forward(x2, packed, use_non_linear=True, tb_max=64)
    out2 = jax.block_until_ready(out2)
    ref2 = reference_forward(x2, params, use_non_linear=True)
    assert out2.shape == (batch2, output_dim)
    assert jnp.allclose(out2, ref2, atol=1e-4, rtol=1e-4)

    print("KERNEL_OK")
</pallas_src>

<mosaic_0001>
module attributes {stable_mosaic.version = 11 : i64} {
  func.func @_classifier_kernel(%arg0: i32, %arg1: memref<8x32xf32, #tpu.memory_space<vmem>>, %arg2: memref<32x32xf32, #tpu.memory_space<vmem>>, %arg3: memref<32x32xf32, #tpu.memory_space<vmem>>, %arg4: memref<32x128xf32, #tpu.memory_space<vmem>>, %arg5: memref<3x128xf32, #tpu.memory_space<vmem>>, %arg6: memref<8x128xf32, #tpu.memory_space<vmem>>) attributes {dimension_semantics = [#tpu.dimension_semantics<parallel>], iteration_bounds = array<i64: 1>, scalar_prefetch = 0 : i64, scratch_operands = 0 : i64, tpu.core_type = #tpu.core_type<tc>, window_params = [{transform_indices = @transform_0, window_bounds = array<i64: 8, 32>}, {pipeline_mode = #tpu.pipeline_mode<synchronous>, transform_indices = @transform_1, window_bounds = array<i64: 32, 32>}, {pipeline_mode = #tpu.pipeline_mode<synchronous>, transform_indices = @transform_2, window_bounds = array<i64: 32, 32>}, {pipeline_mode = #tpu.pipeline_mode<synchronous>, transform_indices = @transform_3, window_bounds = array<i64: 32, 128>}, {pipeline_mode = #tpu.pipeline_mode<synchronous>, transform_indices = @transform_4, window_bounds = array<i64: 3, 128>}, {transform_indices = @transform_5, window_bounds = array<i64: 8, 128>}]} {
    %c0 = arith.constant 0 : index
    %c0_0 = arith.constant 0 : index
    %0 = vector.load %arg1[%c0, %c0_0] : memref<8x32xf32, #tpu.memory_space<vmem>>, vector<8x32xf32>
    %c0_1 = arith.constant 0 : index
    %c0_2 = arith.constant 0 : index
    %1 = vector.load %arg5[%c0_1, %c0_2] : memref<3x128xf32, #tpu.memory_space<vmem>>, vector<3x128xf32>
    %2 = vector.extract_strided_slice %1 {offsets = [0, 0], sizes = [1, 32], strides = [1, 1]} : vector<3x128xf32> to vector<1x32xf32>
    %3 = vector.extract_strided_slice %1 {offsets = [1, 0], sizes = [1, 32], strides = [1, 1]} : vector<3x128xf32> to vector<1x32xf32>
    %4 = vector.extract_strided_slice %1 {offsets = [2, 0], sizes = [1, 128], strides = [1, 1]} : vector<3x128xf32> to vector<1x128xf32>
    %c0_3 = arith.constant 0 : index
    %c0_4 = arith.constant 0 : index
    %5 = vector.load %arg2[%c0_3, %c0_4] : memref<32x32xf32, #tpu.memory_space<vmem>>, vector<32x32xf32>
    %cst = arith.constant dense<0.000000e+00> : vector<8x32xf32>
    %6 = tpu.matmul %0, %5, %cst {dimension_numbers = #tpu.dot_dimension_numbers<[1], [0], [0], [1], [0, 0, 1, 1], [], []>} : vector<8x32xf32>, vector<32x32xf32>, vector<8x32xf32> -> vector<8x32xf32>
    %7 = vector.broadcast %2 : vector<1x32xf32> to vector<8x32xf32>
    %8 = arith.addf %6, %7 : vector<8x32xf32>
    %cst_5 = arith.constant 0.000000e+00 : f32
    %9 = vector.broadcast %cst_5 : f32 to vector<8x32xf32>
    %10 = arith.maximumf %8, %9 : vector<8x32xf32>
    %c0_6 = arith.constant 0 : index
    %c0_7 = arith.constant 0 : index
    %11 = vector.load %arg3[%c0_6, %c0_7] : memref<32x32xf32, #tpu.memory_space<vmem>>, vector<32x32xf32>
    %cst_8 = arith.constant dense<0.000000e+00> : vector<8x32xf32>
    %12 = tpu.matmul %10, %11, %cst_8 {dimension_numbers = #tpu.dot_dimension_numbers<[1], [0], [0], [1], [0, 0, 1, 1], [], []>} : vector<8x32xf32>, vector<32x32xf32>, vector<8x32xf32> -> vector<8x32xf32>
    %13 = vector.broadcast %3 : vector<1x32xf32> to vector<8x32xf32>
    %14 = arith.addf %12, %13 : vector<8x32xf32>
    %cst_9 = arith.constant 0.000000e+00 : f32
    %15 = vector.broadcast %cst_9 : f32 to vector<8x32xf32>
    %16 = arith.maximumf %14, %15 : vector<8x32xf32>
    %c0_10 = arith.constant 0 : index
    %c0_11 = arith.constant 0 : index
    %17 = vector.load %arg4[%c0_10, %c0_11] : memref<32x128xf32, #tpu.memory_space<vmem>>, vector<32x128xf32>
    %cst_12 = arith.constant dense<0.000000e+00> : vector<8x128xf32>
    %18 = tpu.matmul %16, %17, %cst_12 {dimension_numbers = #tpu.dot_dimension_numbers<[1], [0], [0], [1], [0, 0, 1, 1], [], []>} : vector<8x32xf32>, vector<32x128xf32>, vector<8x128xf32> -> vector<8x128xf32>
    %19 = vector.broadcast %4 : vector<1x128xf32> to vector<8x128xf32>
    %20 = arith.addf %18, %19 : vector<8x128xf32>
    %cst_13 = arith.constant dense<0xFF800000> : vector<8xf32>
    %21 = vector.multi_reduction <maximumf>, %20, %cst_13 [1] : vector<8x128xf32> to vector<8xf32>
    %22 = vector.shape_cast %21 : vector<8xf32> to vector<8x1xf32>
    %23 = vector.broadcast %22 : vector<8x1xf32> to vector<8x128xf32>
    %24 = arith.subf %20, %23 : vector<8x128xf32>
    %25 = math.exp %24 : vector<8x128xf32>
    %cst_14 = arith.constant dense<0.000000e+00> : vector<8xf32>
    %26 = vector.multi_reduction <add>, %25, %cst_14 [1] : vector<8x128xf32> to vector<8xf32>
    %27 = vector.shape_cast %26 : vector<8xf32> to vector<8x1xf32>
    %28 = math.log %27 : vector<8x1xf32>
    %29 = vector.broadcast %28 : vector<8x1xf32> to vector<8x128xf32>
    %30 = arith.subf %24, %29 : vector<8x128xf32>
    %c0_15 = arith.constant 0 : index
    %c0_16 = arith.constant 0 : index
    %31 = vector.load %arg6[%c0_15, %c0_16] : memref<8x128xf32, #tpu.memory_space<vmem>>, vector<8x128xf32>
    tpu.vector_store %arg6[%c0_15, %c0_16], %30 {strides = array<i32>} : memref<8x128xf32, #tpu.memory_space<vmem>>, vector<8x128xf32>,
    return
  }
  func.func @transform_0(%arg0: i32) -> (i32, i32) {
    %c0_i32 = arith.constant 0 : i32
    %c0_i32_0 = arith.constant 0 : i32
    return %arg0, %c0_i32 : i32, i32
  }
  func.func @transform_1(%arg0: i32) -> (i32, i32) {
    %c0_i32 = arith.constant 0 : i32
    %c0_i32_0 = arith.constant 0 : i32
    %c0_i32_1 = arith.constant 0 : i32
    return %c0_i32, %c0_i32_0 : i32, i32
  }
  func.func @transform_2(%arg0: i32) -> (i32, i32) {
    %c0_i32 = arith.constant 0 : i32
    %c0_i32_0 = arith.constant 0 : i32
    %c0_i32_1 = arith.constant 0 : i32
    return %c0_i32, %c0_i32_0 : i32, i32
  }
  func.func @transform_3(%arg0: i32) -> (i32, i32) {
    %c0_i32 = arith.constant 0 : i32
    %c0_i32_0 = arith.constant 0 : i32
    %c0_i32_1 = arith.constant 0 : i32
    return %c0_i32, %c0_i32_0 : i32, i32
  }
  func.func @transform_4(%arg0: i32) -> (i32, i32) {
    %c0_i32 = arith.constant 0 : i32
    %c0_i32_0 = arith.constant 0 : i32
    %c0_i32_1 = arith.constant 0 : i32
    return %c0_i32, %c0_i32_0 : i32, i32
  }
  func.func @transform_5(%arg0: i32) -> (i32, i32) {
    %c0_i32 = arith.constant 0 : i32
    %c0_i32_0 = arith.constant 0 : i32
    return %arg0, %c0_i32 : i32, i32
  }
}

</mosaic_0001>

<llo_original>
// kernel: tpu_custom_call.1
$region0: #{tpu_custom_call.1}
  #allocation0 [shape = 'u32[]', space=smem, size = 0x4, offset = 0x4, fixed_abs, tag = 'smem constant byte address 0x4 - core index']
  #allocation1 [shape = 'u32[144,128]{1,0:T(1,128)}', space=vmem, size = 0x12000, scoped, tag = 'internal scratch']
  %s0 = inlined_call_operand.hbm [shape: f32[8,32], index: 0, kind: input, shape index: {}]
  %s1 = inlined_call_operand.hbm [shape: f32[32,32], index: 1, kind: input, shape index: {}]
  %s2 = inlined_call_operand.hbm [shape: f32[32,32], index: 2, kind: input, shape index: {}]
  %s3 = inlined_call_operand.hbm [shape: f32[32,128], index: 3, kind: input, shape index: {}]
  %s4 = inlined_call_operand.vmem [shape: f32[3,128], index: 4, kind: input, shape index: {}]
  %s5 = inlined_call_operand.hbm [shape: f32[8,128], index: 5, kind: output, shape index: {}]
  %s6 = sld [smem:[#allocation0]]
  $region46: #{tpu_custom_call.1} parent=0
    _
  %s8 = ssub.s32 1, %s6
  %s9 = scalar_select 0, %s8, %s6
  $region1: #{tpu_custom_call.1} parent=0
    #allocation2 [shape = 'u8[4096]{0}', space=vmem, size = 0x1000, scoped, tag = 'input window, operand 0, single buffered']
    #allocation3 [shape = 's32[1]{0}', space=sflag, size = 0x4, scoped, tag = 'scoped memory for tpu_custom_call.1']
    #allocation4 [shape = 's32[1]{0}', space=sflag, size = 0x4, scoped, tag = 'scoped memory for tpu_custom_call.1']
    #allocation5 [shape = 'u8[16384]{0}', space=vmem, size = 0x4000, scoped, tag = 'input window, operand 1, single buffered']
    #allocation6 [shape = 's32[1]{0}', space=sflag, size = 0x4, scoped, tag = 'scoped memory for tpu_custom_call.1']
    #allocation7 [shape = 'u8[16384]{0}', space=vmem, size = 0x4000, scoped, tag = 'input window, operand 2, single buffered']
    #allocation8 [shape = 'u8[16384]{0}', space=vmem, size = 0x4000, scoped, tag = 'input window, operand 3, single buffered']
    #allocation9 [shape = 's32[1]{0}', space=sflag, size = 0x4, scoped, tag = 'scoped memory for tpu_custom_call.1']
    #allocation10 [shape = 'u8[4096]{0}', space=vmem, size = 0x1000, scoped, tag = 'output window, operand 0, single buffered']
    %10 = vsyncpa [#allocation3], 0
    %11 = vsyncpa [#allocation6], 0
    %12 = vsyncpa [#allocation9], 0
    %13 = vsyncpa [#allocation4], 0
    // Predicated region
    $region2: #{tpu_custom_call.1} parent=1 // pred_check
      _
    $region3: #{tpu_custom_call.1} parent=1 // pred_check_branch
      %15 = sbr.rel (0) target = $region5
    $region4: #{tpu_custom_call.1} parent=1 // pred_region
      %s17 = ssub.s32 128, 128
      %18 = vsyncadd [#allocation3], %s17
      %s20 = sshll.u32 [#allocation2], 4
      %s21 = int_to_ptr.vmem [resolvable:$true] %s20
      %23 = dma.hbm_to_vmem [thread:$0]  %s0, 128, %s21, [#allocation3]
    $region5: #{tpu_custom_call.1} parent=1 // pred_fallthru
      _
    // Predicated region
    $region6: #{tpu_custom_call.1} parent=1 // pred_check
      _
    $region7: #{tpu_custom_call.1} parent=1 // pred_check_branch
      %25 = sbr.rel (0) target = $region9
    $region8: #{tpu_custom_call.1} parent=1 // pred_region
      %s27 = ssub.s32 512, 512
      %28 = vsyncadd [#allocation6], %s27
      %s29 = sshll.u32 [#allocation5], 4
      %s30 = int_to_ptr.vmem [resolvable:$true] %s29
      %35 = dma.hbm_to_vmem [thread:$0]  %s1, 512, %s30, [#allocation6], 128, 128, 8
    $region9: #{tpu_custom_call.1} parent=1 // pred_fallthru
      _
    // Predicated region
    $region10: #{tpu_custom_call.1} parent=1 // pred_check
      _
    $region11: #{tpu_custom_call.1} parent=1 // pred_check_branch
      %37 = sbr.rel (0) target = $region13
    $region12: #{tpu_custom_call.1} parent=1 // pred_region
      %s39 = ssub.s32 512, 512
      %40 = vsyncadd [#allocation6], %s39
      %s41 = sshll.u32 [#allocation7], 4
      %s42 = int_to_ptr.vmem [resolvable:$true] %s41
      %47 = dma.hbm_to_vmem [thread:$0]  %s2, 512, %s42, [#allocation6], 128, 128, 8
    $region13: #{tpu_custom_call.1} parent=1 // pred_fallthru
      _
    // Predicated region
    $region14: #{tpu_custom_call.1} parent=1 // pred_check
      _
    $region15: #{tpu_custom_call.1} parent=1 // pred_check_branch
      %49 = sbr.rel (0) target = $region17
    $region16: #{tpu_custom_call.1} parent=1 // pred_region
      %s51 = ssub.s32 512, 512
      %52 = vsyncadd [#allocation9], %s51
      %s53 = sshll.u32 [#allocation8], 4
      %s54 = int_to_ptr.vmem [resolvable:$true] %s53
      %59 = dma.hbm_to_vmem [thread:$0]  %s3, 512, %s54, [#allocation9], 128, 128, 8
    $region17: #{tpu_custom_call.1} parent=1 // pred_fallthru
      _
    // Predicated region
    $region18: #{tpu_custom_call.1} parent=1 // pred_check
      _
    $region19: #{tpu_custom_call.1} parent=1 // pred_check_branch
      %61 = sbr.rel (0) target = $region21
    $region20: #{tpu_custom_call.1} parent=1 // pred_region
      _
    $region21: #{tpu_custom_call.1} parent=1 // pred_fallthru
      _
    // Predicated region
    $region22: #{tpu_custom_call.1} parent=1 // pred_check
      _
    $region23: #{tpu_custom_call.1} parent=1 // pred_check_branch
      %63 = sbr.rel (0) target = $region25
    $region24: #{tpu_custom_call.1} parent=1 // pred_region
      %64 = dma.done [#allocation3], 128
    $region25: #{tpu_custom_call.1} parent=1 // pred_fallthru
      _
    // Predicated region
    $region26: #{tpu_custom_call.1} parent=1 // pred_check
      _
    $region27: #{tpu_custom_call.1} parent=1 // pred_check_branch
      %66 = sbr.rel (0) target = $region29
    $region28: #{tpu_custom_call.1} parent=1 // pred_region
      %67 = dma.done [#allocation6], 512
    $region29: #{tpu_custom_call.1} parent=1 // pred_fallthru
      _
    // Predicated region
    $region30: #{tpu_custom_call.1} parent=1 // pred_check
      _
    $region31: #{tpu_custom_call.1} parent=1 // pred_check_branch
      %69 = sbr.rel (0) target = $region33
    $region32: #{tpu_custom_call.1} parent=1 // pred_region
      %70 = dma.done [#allocation6], 512
    $region33: #{tpu_custom_call.1} parent=1 // pred_fallthru
      _
    // Predicated region
    $region34: #{tpu_custom_call.1} parent=1 // pred_check
      _
    $region35: #{tpu_custom_call.1} parent=1 // pred_check_branch
      %72 = sbr.rel (0) target = $region37
    $region36: #{tpu_custom_call.1} parent=1 // pred_region
      %73 = dma.done [#allocation9], 512
    $region37: #{tpu_custom_call.1} parent=1 // pred_fallthru
      _
    %v74 = vld [vmem:[#allocation2] sm:$0xff]
    %v75 = vld [vmem:[%s4] sm:$0x7]
    %v76 = vld [vmem:[#allocation5] sm:$0xff]
    %v77 = vld [vmem:[#allocation5 + $0x8] sm:$0xff]
    %v78 = vld [vmem:[#allocation5 + $0x10] sm:$0xff]
    %v79 = vld [vmem:[#allocation5 + $0x18] sm:$0xff]
    %v80 = vlaneseq
    %v81 = vshrl.u32 %v80, 7
    %v82 = vsub.s32 0, %v81
    %v83 = vrot.slane %v75, %v82
    %vm84 = vcmask 261120
    %v86 = vsel %vm84, %v74, 0
    %88 = vmatprep.subr.mxu0 0.0
    %89 = vmatpush1.msra.mxu0 %v76
    %90 = vmatprep.subr.mxu0 0.0
    %91 = vmatpush1.msra.mxu0 %v77
    %92 = vmatprep.subr.mxu0 0.0
    %93 = vmatpush1.msra.mxu0 %v78
    %94 = vmatprep.subr.mxu0 0.0
    %95 = vmatpush1.msra.mxu0 %v79
    %96 = vmatprep.subr.mxu0 0.0
    %97 = vmatpush1.msra.mxu0 0.0
    %98 = vmatprep.subr.mxu0 0.0
    %99 = vmatpush1.msra.mxu0 0.0
    %100 = vmatprep.subr.mxu0 0.0
    %101 = vmatpush1.msra.mxu0 0.0
    %102 = vmatprep.subr.mxu0 0.0
    %103 = vmatpush1.msra.mxu0 0.0
    %104 = vmatprep.subr.mxu0 0.0
    %105 = vmatpush1.msra.mxu0 0.0
    %106 = vmatprep.subr.mxu0 0.0
    %107 = vmatpush1.msra.mxu0 0.0
    %108 = vmatprep.subr.mxu0 0.0
    %109 = vmatpush1.msra.mxu0 0.0
    %110 = vmatprep.subr.mxu0 0.0
    %111 = vmatpush1.msra.mxu0 0.0
    %112 = vmatprep.subr.mxu0 0.0
    %113 = vmatpush1.msra.mxu0 0.0
    %114 = vmatprep.subr.mxu0 0.0
    %115 = vmatpush1.msra.mxu0 0.0
    %116 = vmatprep.subr.mxu0 0.0
    %117 = vmatpush1.msra.mxu0 0.0
    %118 = vmatprep.subr.mxu0 0.0
    %119 = vmatpush1.msra.mxu0 0.0
    %120 = vmatprep.subr.mxu0 0.0
    %121 = vmatpush1.msra.mxu0 0.0
    %122 = vmatprep.subr.mxu0 0.0
    %123 = vmatpush1.msra.mxu0 0.0
    %124 = vmatprep.subr.mxu0 0.0
    %125 = vmatpush1.msra.mxu0 0.0
    %126 = vmatprep.subr.mxu0 0.0
    %127 = vmatpush1.msra.mxu0 0.0
    %128 = vmatprep.subr.mxu0 0.0
    %129 = vmatpush1.msra.mxu0 0.0
    %130 = vmatprep.subr.mxu0 0.0
    %131 = vmatpush1.msra.mxu0 0.0
    %132 = vmatprep.subr.mxu0 0.0
    %133 = vmatpush1.msra.mxu0 0.0
    %134 = vmatprep.subr.mxu0 0.0
    %135 = vmatpush1.msra.mxu0 0.0
    %136 = vmatprep.subr.mxu0 0.0
    %137 = vmatpush1.msra.mxu0 0.0
    %138 = vmatprep.subr.mxu0 0.0
    %139 = vmatpush1.msra.mxu0 0.0
    %140 = vmatprep.subr.mxu0 0.0
    %141 = vmatpush1.msra.mxu0 0.0
    %142 = vmatprep.subr.mxu0 0.0
    %143 = vmatpush1.msra.mxu0 0.0
    %144 = vmatprep.subr.mxu0 0.0
    %145 = vmatpush1.msra.mxu0 0.0
    %146 = vmatprep.subr.mxu0 0.0
    %147 = vmatpush1.msra.mxu0 0.0
    %148 = vmatprep.subr.mxu0 0.0
    %149 = vmatpush1.msra.mxu0 0.0
    %150 = vmatprep.subr.mxu0 0.0
    %151 = vmatpush1.msra.mxu0 0.0
    %152 = vmatprep.mubr.f32.mxu0 0.0
    %153 = vmatmul.mubr.f32.gmra.mrb[0].mxu0 %v86
    %v154 = vpop.f32.mrb[0].mxu0
    %v155 = vadd.f32 %v83, %v154
    %v156 = vpop.f32.mrb[0].mxu0
    %157 = vdwg.mxu0
    %v158 = vmax.f32 %v155, 0.0
    %v159 = vld [vmem:[#allocation7] sm:$0xff]
    %v160 = vld [vmem:[#allocation7 + $0x8] sm:$0xff]
    %v161 = vld [vmem:[#allocation7 + $0x10] sm:$0xff]
    %v162 = vld [vmem:[#allocation7 + $0x18] sm:$0xff]
    %v163 = vlaneseq
    %v164 = vshrl.u32 %v163, 7
    %v165 = vsub.s32 1, %v164
    %v166 = vrot.slane %v75, %v165
    %v168 = vsel %vm84, %v158, 0
    %170 = vmatprep.subr.mxu0 0.0
    %171 = vmatpush1.msra.mxu0 %v159
    %172 = vmatprep.subr.mxu0 0.0
    %173 = vmatpush1.msra.mxu0 %v160
    %174 = vmatprep.subr.mxu0 0.0
    %175 = vmatpush1.msra.mxu0 %v161
    %176 = vmatprep.subr.mxu0 0.0
    %177 = vmatpush1.msra.mxu0 %v162
    %178 = vmatprep.subr.mxu0 0.0
    %179 = vmatpush1.msra.mxu0 0.0
    %180 = vmatprep.subr.mxu0 0.0
    %181 = vmatpush1.msra.mxu0 0.0
    %182 = vmatprep.subr.mxu0 0.0
    %183 = vmatpush1.msra.mxu0 0.0
    %184 = vmatprep.subr.mxu0 0.0
    %185 = vmatpush1.msra.mxu0 0.0
    %186 = vmatprep.subr.mxu0 0.0
    %187 = vmatpush1.msra.mxu0 0.0
    %188 = vmatprep.subr.mxu0 0.0
    %189 = vmatpush1.msra.mxu0 0.0
    %190 = vmatprep.subr.mxu0 0.0
    %191 = vmatpush1.msra.mxu0 0.0
    %192 = vmatprep.subr.mxu0 0.0
    %193 = vmatpush1.msra.mxu0 0.0
    %194 = vmatprep.subr.mxu0 0.0
    %195 = vmatpush1.msra.mxu0 0.0
    %196 = vmatprep.subr.mxu0 0.0
    %197 = vmatpush1.msra.mxu0 0.0
    %198 = vmatprep.subr.mxu0 0.0
    %199 = vmatpush1.msra.mxu0 0.0
    %200 = vmatprep.subr.mxu0 0.0
    %201 = vmatpush1.msra.mxu0 0.0
    %202 = vmatprep.subr.mxu0 0.0
    %203 = vmatpush1.msra.mxu0 0.0
    %204 = vmatprep.subr.mxu0 0.0
    %205 = vmatpush1.msra.mxu0 0.0
    %206 = vmatprep.subr.mxu0 0.0
    %207 = vmatpush1.msra.mxu0 0.0
    %208 = vmatprep.subr.mxu0 0.0
    %209 = vmatpush1.msra.mxu0 0.0
    %210 = vmatprep.subr.mxu0 0.0
    %211 = vmatpush1.msra.mxu0 0.0
    %212 = vmatprep.subr.mxu0 0.0
    %213 = vmatpush1.msra.mxu0 0.0
    %214 = vmatprep.subr.mxu0 0.0
    %215 = vmatpush1.msra.mxu0 0.0
    %216 = vmatprep.subr.mxu0 0.0
    %217 = vmatpush1.msra.mxu0 0.0
    %218 = vmatprep.subr.mxu0 0.0
    %219 = vmatpush1.msra.mxu0 0.0
    %220 = vmatprep.subr.mxu0 0.0
    %221 = vmatpush1.msra.mxu0 0.0
    %222 = vmatprep.subr.mxu0 0.0
    %223 = vmatpush1.msra.mxu0 0.0
    %224 = vmatprep.subr.mxu0 0.0
    %225 = vmatpush1.msra.mxu0 0.0
    %226 = vmatprep.subr.mxu0 0.0
    %227 = vmatpush1.msra.mxu0 0.0
    %228 = vmatprep.subr.mxu0 0.0
    %229 = vmatpush1.msra.mxu0 0.0
    %230 = vmatprep.subr.mxu0 0.0
    %231 = vmatpush1.msra.mxu0 0.0
    %232 = vmatprep.subr.mxu0 0.0
    %233 = vmatpush1.msra.mxu0 0.0
    %234 = vmatprep.mubr.f32.mxu0 0.0
    %235 = vmatmul.mubr.f32.gmra.mrb[0].mxu0 %v168
    %v236 = vpop.f32.mrb[0].mxu0
    %v237 = vadd.f32 %v166, %v236
    %v238 = vpop.f32.mrb[0].mxu0
    %239 = vdwg.mxu0
    %v240 = vmax.f32 %v237, 0.0
    %v241 = vld [vmem:[#allocation8] sm:$0xff]
    %v242 = vld [vmem:[#allocation8 + $0x8] sm:$0xff]
    %v243 = vld [vmem:[#allocation8 + $0x10] sm:$0xff]
    %v244 = vld [vmem:[#allocation8 + $0x18] sm:$0xff]
    %v245 = vlaneseq
    %v246 = vshrl.u32 %v245, 7
    %v247 = vsub.s32 2, %v246
    %v248 = vrot.slane %v75, %v247
    %v250 = vsel %vm84, %v240, 0
    %252 = vmatprep.subr.mxu0 0.0
    %253 = vmatpush1.msra.mxu0 %v241
    %254 = vmatprep.subr.mxu0 0.0
    %255 = vmatpush1.msra.mxu0 %v242
    %256 = vmatprep.subr.mxu0 0.0
    %257 = vmatpush1.msra.mxu0 %v243
    %258 = vmatprep.subr.mxu0 0.0
    %259 = vmatpush1.msra.mxu0 %v244
    %260 = vmatprep.subr.mxu0 0.0
    %261 = vmatpush1.msra.mxu0 0.0
    %262 = vmatprep.subr.mxu0 0.0
    %263 = vmatpush1.msra.mxu0 0.0
    %264 = vmatprep.subr.mxu0 0.0
    %265 = vmatpush1.msra.mxu0 0.0
    %266 = vmatprep.subr.mxu0 0.0
    %267 = vmatpush1.msra.mxu0 0.0
    %268 = vmatprep.subr.mxu0 0.0
    %269 = vmatpush1.msra.mxu0 0.0
    %270 = vmatprep.subr.mxu0 0.0
    %271 = vmatpush1.msra.mxu0 0.0
    %272 = vmatprep.subr.mxu0 0.0
    %273 = vmatpush1.msra.mxu0 0.0
    %274 = vmatprep.subr.mxu0 0.0
    %275 = vmatpush1.msra.mxu0 0.0
    %276 = vmatprep.subr.mxu0 0.0
    %277 = vmatpush1.msra.mxu0 0.0
    %278 = vmatprep.subr.mxu0 0.0
    %279 = vmatpush1.msra.mxu0 0.0
    %280 = vmatprep.subr.mxu0 0.0
    %281 = vmatpush1.msra.mxu0 0.0
    %282 = vmatprep.subr.mxu0 0.0
    %283 = vmatpush1.msra.mxu0 0.0
    %284 = vmatprep.subr.mxu0 0.0
    %285 = vmatpush1.msra.mxu0 0.0
    %286 = vmatprep.subr.mxu0 0.0
    %287 = vmatpush1.msra.mxu0 0.0
    %288 = vmatprep.subr.mxu0 0.0
    %289 = vmatpush1.msra.mxu0 0.0
    %290 = vmatprep.subr.mxu0 0.0
    %291 = vmatpush1.msra.mxu0 0.0
    %292 = vmatprep.subr.mxu0 0.0
    %293 = vmatpush1.msra.mxu0 0.0
    %294 = vmatprep.subr.mxu0 0.0
    %295 = vmatpush1.msra.mxu0 0.0
    %296 = vmatprep.subr.mxu0 0.0
    %297 = vmatpush1.msra.mxu0 0.0
    %298 = vmatprep.subr.mxu0 0.0
    %299 = vmatpush1.msra.mxu0 0.0
    %300 = vmatprep.subr.mxu0 0.0
    %301 = vmatpush1.msra.mxu0 0.0
    %302 = vmatprep.subr.mxu0 0.0
    %303 = vmatpush1.msra.mxu0 0.0
    %304 = vmatprep.subr.mxu0 0.0
    %305 = vmatpush1.msra.mxu0 0.0
    %306 = vmatprep.subr.mxu0 0.0
    %307 = vmatpush1.msra.mxu0 0.0
    %308 = vmatprep.subr.mxu0 0.0
    %309 = vmatpush1.msra.mxu0 0.0
    %310 = vmatprep.subr.mxu0 0.0
    %311 = vmatpush1.msra.mxu0 0.0
    %312 = vmatprep.subr.mxu0 0.0
    %313 = vmatpush1.msra.mxu0 0.0
    %314 = vmatprep.subr.mxu0 0.0
    %315 = vmatpush1.msra.mxu0 0.0
    %316 = vmatprep.mubr.f32.mxu0 0.0
    %317 = vmatmul.mubr.f32.gmra.mrb[0].mxu0 %v250
    %v318 = vpop.f32.mrb[0].mxu0
    %v319 = vadd.f32 %v248, %v318
    %v320 = vpop.f32.mrb[0].mxu0
    %321 = vdwg.mxu0
    %322 = vmax.xlane.f32.xlu0 %v319
    %v323 = vpop.xlane.xlu0 %322
    %v324 = vsub.f32 %v319, %v323
    %v325 = vmul.f32 %v324, 1.442695
    %v326 = vpow.pop %v325
    %327 = vadd.xlane.f32.xlu0 %v326
    %v328 = vpop.xlane.xlu0 %327
    %v329 = vlog2.pop %v328
    %v330 = vmul.f32 %v329, 0.6931472
    %v331 = vsub.f32 %v324, %v330
    %332 = vst [vmem:[#allocation10] sm:$0xff] %v331
    // Predicated region
    $region38: #{tpu_custom_call.1} parent=1 // pred_check
      _
    $region39: #{tpu_custom_call.1} parent=1 // pred_check_branch
      %334 = sbr.rel (0) target = $region41
    $region40: #{tpu_custom_call.1} parent=1 // pred_region
      %s336 = ssub.s32 128, 128
      %337 = vsyncadd [#allocation4], %s336
      %s339 = sshll.u32 [#allocation10], 4
      %s340 = int_to_ptr.vmem [resolvable:$true] %s339
      %342 = dma.vmem_to_hbm [thread:$0]  %s340, 128, %s5, [#allocation4]
    $region41: #{tpu_custom_call.1} parent=1 // pred_fallthru
      _
    // Predicated region
    $region42: #{tpu_custom_call.1} parent=1 // pred_check
      _
    $region43: #{tpu_custom_call.1} parent=1 // pred_check_branch
      %344 = sbr.rel (0) target = $region45
    $region44: #{tpu_custom_call.1} parent=1 // pred_region
      %345 = dma.done [#allocation4], 128
    $region45: #{tpu_custom_call.1} parent=1 // pred_fallthru
      _
    %346 = vsyncpa [#allocation3], 1
    %347 = vsyncpa [#allocation6], 1
    %348 = vsyncpa [#allocation9], 1
    %349 = vsyncpa [#allocation4], 1

</llo_original>
